<compile_context>
chip_gen: v7x
topology: tpu7x:2x2x1
jax: 0.10.0
libtpu: 0.0.40
codegen_flags: <defaults>
</compile_context>

<pallas_src>
import numpy as np

import jax
import jax.numpy as jnp
from jax.experimental import pallas as pl
from jax.experimental.pallas import tpu as pltpu

_EPS = 1e-5
_VMEM = pl.BlockSpec(memory_space=pltpu.MemorySpace.VMEM)


def _round_up(x, m):
    return ((x + m - 1) // m) * m


# ---------------------------------------------------------------------------
# host-side weight preprocessing
# ---------------------------------------------------------------------------
def _band_conv_weights(w_hwio, W, lpad):
    """Fold a (3,3,Cin,Cout) conv weight into a banded matrix (3*lpad, W*Cout).

    Row dy*lpad + (w+dx)*Cin + ci, column w*Cout + co holds w[dy, dx, ci, co].
    Multiplying the (N*H, 3*lpad) vertical-tap im2col buffer (lanes = padded
    W*Cin rows, zero-padded to lpad) by this matrix yields the full 3x3 conv
    with the output already in the merged lane-dense (N*H, W*Cout) layout.
    """
    w = np.asarray(w_hwio, dtype=np.float32)
    _, _, cin, cout = w.shape
    wb = np.zeros((3 * lpad, W * cout), np.float32)
    for dy in range(3):
        for dx in range(3):
            blk = w[dy, dx]                                # (cin, cout)
            for xw in range(W):
                r0 = dy * lpad + (xw + dx) * cin
                wb[r0:r0 + cin, xw * cout:(xw + 1) * cout] = blk
    return jnp.asarray(wb)


def _fold_expand_mats(W, C):
    """fold (W*C, C): sums merged (w, c) lanes per channel; expand = fold.T."""
    expand = np.tile(np.eye(C, dtype=np.float32), (1, W))   # (C, W*C)
    return jnp.asarray(expand.T.copy()), jnp.asarray(expand)


# ---------------------------------------------------------------------------
# fused conv3x3 + train-mode BatchNorm (+ ReLU) body, shared by two kernels
# ---------------------------------------------------------------------------
def _conv3x3_bn_body(x, pad_ref, col_ref, wb_ref, g_ref, be_ref,
                     fold_ref, expand_ref, N, H, W, cin, cout, relu):
    """x: (N*H, W*cin) f32 merged-NHWC activation -> (N*H, W*cout) f32."""
    NH = N * H
    lpad = pad_ref.shape[2]                 # (W+2)*cin rounded up to 128

    # Zero only the 1-pixel halo (+ alignment tail); interior is overwritten.
    pad_ref[:, 0:1, :] = jnp.zeros((N, 1, lpad), jnp.float32)
    pad_ref[:, H + 1:H + 2, :] = jnp.zeros((N, 1, lpad), jnp.float32)
    pad_ref[:, :, 0:cin] = jnp.zeros((N, H + 2, cin), jnp.float32)
    pad_ref[:, :, (W + 1) * cin:] = jnp.zeros(
        (N, H + 2, lpad - (W + 1) * cin), jnp.float32)
    pad_ref[:, 1:H + 1, cin:(W + 1) * cin] = x.reshape(N, H, W * cin)

    # Vertical-tap im2col (3 lane-aligned copies) then ONE MXU matmul per conv.
    for dy in range(3):
        col_ref[:, dy * lpad:(dy + 1) * lpad] = (
            pad_ref[:, dy:dy + H, :].reshape(NH, lpad))
    y = jnp.dot(col_ref[...], wb_ref[...],
                preferred_element_type=jnp.float32)        # (NH, W*cout)

    # Training-mode BN, single pass: var = E[y^2] - mu^2 (conv bias omitted --
    # it is cancelled exactly by the mean subtraction).
    inv_m = 1.0 / float(N * H * W)
    rsum = jnp.sum(y, axis=0, keepdims=True)               # (1, W*cout) per (w,c)
    rsumsq = jnp.sum(y * y, axis=0, keepdims=True)
    mu = jnp.dot(rsum, fold_ref[...], preferred_element_type=jnp.float32) * inv_m
    ex2 = jnp.dot(rsumsq, fold_ref[...], preferred_element_type=jnp.float32) * inv_m
    var = ex2 - mu * mu                                    # (1, cout)
    scale = g_ref[...] * jax.lax.rsqrt(var + _EPS)         # (1, cout)
    shift = be_ref[...] - mu * scale
    scale_b = jnp.dot(scale, expand_ref[...], preferred_element_type=jnp.float32)
    shift_b = jnp.dot(shift, expand_ref[...], preferred_element_type=jnp.float32)
    y = y * scale_b + shift_b
    if relu:
        y = jnp.maximum(y, 0.0)
    return y


# ---------------------------------------------------------------------------
# kernels
# ---------------------------------------------------------------------------
def _make_conv_bn_relu_kernel(N, H, W, cin, cout):
    def kernel(x_ref, wb_ref, g_ref, be_ref, fold_ref, expand_ref,
               o_ref, pad_ref, col_ref):
        y = _conv3x3_bn_body(x_ref[...], pad_ref, col_ref, wb_ref, g_ref, be_ref,
                             fold_ref, expand_ref, N, H, W, cin, cout, relu=True)
        o_ref[...] = y.astype(o_ref.dtype)        # lane-dense (N*H, W*cout) store
    return kernel


def _make_residual_block_kernel(N, H, W, C):
    def kernel(x_ref, wb1_ref, g1_ref, be1_ref, wb2_ref, g2_ref, be2_ref,
               fold_ref, expand_ref, o_ref, pad_ref, col_ref):
        x = x_ref[...]
        y = _conv3x3_bn_body(x, pad_ref, col_ref, wb1_ref, g1_ref, be1_ref,
                             fold_ref, expand_ref, N, H, W, C, C, relu=True)
        r = _conv3x3_bn_body(y, pad_ref, col_ref, wb2_ref, g2_ref, be2_ref,
                             fold_ref, expand_ref, N, H, W, C, C, relu=False)
        o_ref[...] = jnp.maximum(x + r, 0.0).astype(o_ref.dtype)
    return kernel


def _make_linear_kernel(activation):
    def kernel(x_ref, w_ref, b_ref, o_ref):
        y = jnp.dot(x_ref[...], w_ref[...],
                    preferred_element_type=jnp.float32) + b_ref[...]
        if activation == "relu":
            y = jnp.maximum(y, 0.0)
        elif activation == "tanh":
            y = jnp.tanh(y)
        o_ref[...] = y.astype(o_ref.dtype)
    return kernel


# ---------------------------------------------------------------------------
# pallas_call wrappers
# ---------------------------------------------------------------------------
def _conv_scratch(N, H, W, cin):
    lpad = _round_up((W + 2) * cin, 128)
    return [pltpu.VMEM((N, H + 2, lpad), jnp.float32),      # padded activation
            pltpu.VMEM((N * H, 3 * lpad), jnp.float32)]     # vertical-tap im2col


def conv_bn_relu(x_merged, cp, fold, expand, N, H, W, cin, cout):
    return pl.pallas_call(
        _make_conv_bn_relu_kernel(N, H, W, cin, cout),
        out_shape=jax.ShapeDtypeStruct((N * H, W * cout), jnp.float32),
        in_specs=[_VMEM] * 6,
        out_specs=_VMEM,
        scratch_shapes=_conv_scratch(N, H, W, cin),
    )(x_merged, cp["wb"], cp["g"], cp["be"], fold, expand)


def residual_block(x_merged, c1, c2, fold, expand, N, H, W, C):
    return pl.pallas_call(
        _make_residual_block_kernel(N, H, W, C),
        out_shape=jax.ShapeDtypeStruct((N * H, W * C), jnp.float32),
        in_specs=[_VMEM] * 9,
        out_specs=_VMEM,
        scratch_shapes=_conv_scratch(N, H, W, C),
    )(x_merged, c1["wb"], c1["g"], c1["be"], c2["wb"], c2["g"], c2["be"],
      fold, expand)


def linear(x, w, b, activation=None):
    return pl.pallas_call(
        _make_linear_kernel(activation),
        out_shape=jax.ShapeDtypeStruct((x.shape[0], w.shape[1]), jnp.float32),
        in_specs=[_VMEM] * 3,
        out_specs=_VMEM,
    )(x, w, b)


# ---------------------------------------------------------------------------
# DynamicsNet forward (Pallas) and parameters
# ---------------------------------------------------------------------------
def dynamics_net_forward(x_nchw, kp):
    """x_nchw: (N, dim+1, H, W) f32.  Returns (reward, s_new) like DynamicsNet."""
    N, cin, H, W = x_nchw.shape
    dim, rd = kp["dim"], kp["reward_dim"]

    # merged lane-dense NHWC layout: (N*H, W*C)
    x = jnp.transpose(x_nchw, (0, 2, 3, 1)).reshape(N * H, W * cin)

    s = conv_bn_relu(x, kp["stem"], kp["fold"], kp["expand"], N, H, W, cin, dim)
    for blk in kp["blocks"]:
        s = residual_block(s, blk["c1"], blk["c2"], kp["fold"], kp["expand"],
                           N, H, W, dim)

    s_new = jnp.transpose(s.reshape(N, H, W, dim), (0, 3, 1, 2))   # NCHW output

    # Reward head: 1x1 conv == per-pixel linear, PyTorch NCHW flatten, then MLP.
    px = s.reshape(N * H * W, dim)
    r = linear(px, kp["wr"], kp["br"], activation=None)            # (N*H*W, rd)
    r = jnp.transpose(r.reshape(N, H, W, rd), (0, 3, 1, 2)).reshape(N, rd * H * W)
    h = linear(r, kp["fc_w1"], kp["fc_b1"], activation="relu")
    reward = linear(h, kp["fc_w2"], kp["fc_b2"], activation="tanh")
    return reward, s_new


def init_raw_params(key, in_dim, dim, n_blocks, reward_dim, h_dim, support_dim,
                    H, W):
    conv_dim = reward_dim * H * W
    state = [key]

    def nxt():
        state[0], sub = jax.random.split(state[0])
        return sub

    def conv_bn_p(ci, co):
        return dict(
            w=jax.random.normal(nxt(), (3, 3, ci, co), jnp.float32) / np.sqrt(9.0 * ci),
            b=0.05 * jax.random.normal(nxt(), (co,), jnp.float32),
            g=1.0 + 0.1 * jax.random.normal(nxt(), (co,), jnp.float32),
            be=0.05 * jax.random.normal(nxt(), (co,), jnp.float32),
        )

    return dict(
        stem=conv_bn_p(in_dim, dim),
        blocks=[dict(c1=conv_bn_p(dim, dim), c2=conv_bn_p(dim, dim))
                for _ in range(n_blocks)],
        wr=jax.random.normal(nxt(), (dim, reward_dim), jnp.float32) / np.sqrt(dim),
        br=0.05 * jax.random.normal(nxt(), (reward_dim,), jnp.float32),
        fc_w1=jax.random.normal(nxt(), (conv_dim, h_dim), jnp.float32) / np.sqrt(conv_dim),
        fc_b1=0.05 * jax.random.normal(nxt(), (h_dim,), jnp.float32),
        fc_w2=jax.random.normal(nxt(), (h_dim, support_dim), jnp.float32) / np.sqrt(h_dim),
        fc_b2=0.05 * jax.random.normal(nxt(), (support_dim,), jnp.float32),
    )


def prepare_kernel_params(raw, dim, reward_dim, W):
    fold, expand = _fold_expand_mats(W, dim)

    def prep_conv(p, cin):
        lpad = _round_up((W + 2) * cin, 128)
        # conv bias intentionally dropped: cancelled exactly by train-mode BN.
        return dict(wb=_band_conv_weights(p["w"], W, lpad),
                    g=p["g"].reshape(1, -1), be=p["be"].reshape(1, -1))

    cin_stem = raw["stem"]["w"].shape[2]
    return dict(
        dim=dim, reward_dim=reward_dim, fold=fold, expand=expand,
        stem=prep_conv(raw["stem"], cin_stem),
        blocks=[dict(c1=prep_conv(b["c1"], dim), c2=prep_conv(b["c2"], dim))
                for b in raw["blocks"]],
        wr=raw["wr"], br=raw["br"].reshape(1, -1),
        fc_w1=raw["fc_w1"], fc_b1=raw["fc_b1"].reshape(1, -1),
        fc_w2=raw["fc_w2"], fc_b2=raw["fc_b2"].reshape(1, -1),
    )


# ---------------------------------------------------------------------------
# pure-JAX reference (faithful to the PyTorch forward, train-mode BN, with bias)
# ---------------------------------------------------------------------------
def reference_forward(x_nchw, rp):
    x = jnp.transpose(x_nchw, (0, 2, 3, 1))

    def conv_bn(inp, p, relu):
        y = jax.lax.conv_general_dilated(
            inp, p["w"], window_strides=(1, 1), padding=((1, 1), (1, 1)),
            dimension_numbers=("NHWC", "HWIO", "NHWC")) + p["b"]
        mu = jnp.mean(y, axis=(0, 1, 2), keepdims=True)
        var = jnp.mean((y - mu) ** 2, axis=(0, 1, 2), keepdims=True)
        y = (y - mu) * jax.lax.rsqrt(var + _EPS) * p["g"] + p["be"]
        return jnp.maximum(y, 0.0) if relu else y

    s = conv_bn(x, rp["stem"], True)
    for b in rp["blocks"]:
        r = conv_bn(s, b["c1"], True)
        r = conv_bn(r, b["c2"], False)
        s = jnp.maximum(s + r, 0.0)
    s_new = jnp.transpose(s, (0, 3, 1, 2))

    r = jnp.einsum("nhwc,cd->nhwd", s, rp["wr"]) + rp["br"]
    r = jnp.transpose(r, (0, 3, 1, 2)).reshape(x.shape[0], -1)
    h = jnp.maximum(r @ rp["fc_w1"] + rp["fc_b1"], 0.0)
    reward = jnp.tanh(h @ rp["fc_w2"] + rp["fc_b2"])
    return reward, s_new


if __name__ == "__main__":
    key = jax.random.PRNGKey(0)
    kx, kw = jax.random.split(key)

    # Small DynamicsNet config (PyTorch defaults: dim=256, 16 blocks, 6x6 maps).
    N, dim, H, W = 2, 8, 16, 16          # W * dim = 128 -> one full lane tile
    n_blocks = 2
    reward_dim = 8
    h_dim = 32
    support_dim = 2 * 10 + 1
    in_dim = dim + 1                     # DynamicsNet stem consumes dim+1 channels

    s_old = jax.random.normal(kx, (N, in_dim, H, W), jnp.float32)
    raw = init_raw_params(kw, in_dim, dim, n_blocks, reward_dim, h_dim,
                          support_dim, H, W)
    kparams = prepare_kernel_params(raw, dim, reward_dim, W)

    reward, s_new = dynamics_net_forward(s_old, kparams)
    reward, s_new = jax.block_until_ready((reward, s_new))

    ref_reward, ref_s_new = reference_forward(s_old, raw)

    assert reward.shape == (N, support_dim)
    assert s_new.shape == (N, dim, H, W)
    assert float(jnp.max(jnp.abs(s_new - ref_s_new))) < 1e-3, "state mismatch vs reference"
    assert float(jnp.max(jnp.abs(reward - ref_reward))) < 1e-3, "reward mismatch vs reference"

    print("KERNEL_OK")
</pallas_src>

<mosaic_0001>
module attributes {stable_mosaic.version = 11 : i64} {
  func.func @kernel(%arg0: memref<32x144xf32, #tpu.memory_space<vmem>>, %arg1: memref<768x128xf32, #tpu.memory_space<vmem>>, %arg2: memref<1x8xf32, #tpu.memory_space<vmem>>, %arg3: memref<1x8xf32, #tpu.memory_space<vmem>>, %arg4: memref<128x8xf32, #tpu.memory_space<vmem>>, %arg5: memref<8x128xf32, #tpu.memory_space<vmem>>, %arg6: memref<32x128xf32, #tpu.memory_space<vmem>>, %arg7: memref<2x18x256xf32, #tpu.memory_space<vmem>>, %arg8: memref<32x768xf32, #tpu.memory_space<vmem>>) attributes {dimension_semantics = [], scalar_prefetch = 0 : i64, scratch_operands = 2 : i64, tpu.core_type = #tpu.core_type<tc>} {
    %c0 = arith.constant 0 : index
    %c0_0 = arith.constant 0 : index
    %0 = vector.load %arg0[%c0, %c0_0] : memref<32x144xf32, #tpu.memory_space<vmem>>, vector<32x144xf32>
    %cst = arith.constant 0.000000e+00 : f32
    %1 = vector.broadcast %cst : f32 to vector<2x1x256xf32>
    %c0_1 = arith.constant 0 : index
    %c0_2 = arith.constant 0 : index
    %c0_3 = arith.constant 0 : index
    %2 = vector.load %arg7[%c0_1, %c0_2, %c0_3] : memref<2x18x256xf32, #tpu.memory_space<vmem>>, vector<2x1x256xf32>
    tpu.vector_store %arg7[%c0_1, %c0_2, %c0_3], %1 {strides = array<i32>} : memref<2x18x256xf32, #tpu.memory_space<vmem>>, vector<2x1x256xf32>,
    %cst_4 = arith.constant 0.000000e+00 : f32
    %3 = vector.broadcast %cst_4 : f32 to vector<2x1x256xf32>
    %c0_5 = arith.constant 0 : index
    %c17 = arith.constant 17 : index
    %c0_6 = arith.constant 0 : index
    %4 = vector.load %arg7[%c0_5, %c17, %c0_6] : memref<2x18x256xf32, #tpu.memory_space<vmem>>, vector<2x1x256xf32>
    tpu.vector_store %arg7[%c0_5, %c17, %c0_6], %3 {strides = array<i32>} : memref<2x18x256xf32, #tpu.memory_space<vmem>>, vector<2x1x256xf32>,
    %cst_7 = arith.constant 0.000000e+00 : f32
    %5 = vector.broadcast %cst_7 : f32 to vector<2x18x9xf32>
    %c0_8 = arith.constant 0 : index
    %c0_9 = arith.constant 0 : index
    %c0_10 = arith.constant 0 : index
    %6 = vector.load %arg7[%c0_8, %c0_9, %c0_10] : memref<2x18x256xf32, #tpu.memory_space<vmem>>, vector<2x18x9xf32>
    tpu.vector_store %arg7[%c0_8, %c0_9, %c0_10], %5 {strides = array<i32>} : memref<2x18x256xf32, #tpu.memory_space<vmem>>, vector<2x18x9xf32>,
    %cst_11 = arith.constant 0.000000e+00 : f32
    %7 = vector.broadcast %cst_11 : f32 to vector<2x18x103xf32>
    %c0_12 = arith.constant 0 : index
    %c0_13 = arith.constant 0 : index
    %c153 = arith.constant 153 : index
    %8 = vector.load %arg7[%c0_12, %c0_13, %c153] : memref<2x18x256xf32, #tpu.memory_space<vmem>>, vector<2x18x103xf32>
    tpu.vector_store %arg7[%c0_12, %c0_13, %c153], %7 {strides = array<i32>} : memref<2x18x256xf32, #tpu.memory_space<vmem>>, vector<2x18x103xf32>,
    %9 = vector.shape_cast %0 : vector<32x144xf32> to vector<2x16x144xf32>
    %c0_14 = arith.constant 0 : index
    %c1 = arith.constant 1 : index
    %c9 = arith.constant 9 : index
    %10 = vector.load %arg7[%c0_14, %c1, %c9] : memref<2x18x256xf32, #tpu.memory_space<vmem>>, vector<2x16x144xf32>
    tpu.vector_store %arg7[%c0_14, %c1, %c9], %9 {strides = array<i32>} : memref<2x18x256xf32, #tpu.memory_space<vmem>>, vector<2x16x144xf32>,
    %c0_15 = arith.constant 0 : index
    %c0_16 = arith.constant 0 : index
    %c0_17 = arith.constant 0 : index
    %11 = vector.load %arg7[%c0_15, %c0_16, %c0_17] : memref<2x18x256xf32, #tpu.memory_space<vmem>>, vector<2x16x256xf32>
    %12 = vector.shape_cast %11 : vector<2x16x256xf32> to vector<32x256xf32>
    %c0_18 = arith.constant 0 : index
    %c0_19 = arith.constant 0 : index
    %13 = vector.load %arg8[%c0_18, %c0_19] : memref<32x768xf32, #tpu.memory_space<vmem>>, vector<32x256xf32>
    tpu.vector_store %arg8[%c0_18, %c0_19], %12 {strides = array<i32>} : memref<32x768xf32, #tpu.memory_space<vmem>>, vector<32x256xf32>,
    %c0_20 = arith.constant 0 : index
    %c1_21 = arith.constant 1 : index
    %c0_22 = arith.constant 0 : index
    %14 = vector.load %arg7[%c0_20, %c1_21, %c0_22] : memref<2x18x256xf32, #tpu.memory_space<vmem>>, vector<2x16x256xf32>
    %15 = vector.shape_cast %14 : vector<2x16x256xf32> to vector<32x256xf32>
    %c0_23 = arith.constant 0 : index
    %c256 = arith.constant 256 : index
    %16 = vector.load %arg8[%c0_23, %c256] : memref<32x768xf32, #tpu.memory_space<vmem>>, vector<32x256xf32>
    tpu.vector_store %arg8[%c0_23, %c256], %15 {strides = array<i32>} : memref<32x768xf32, #tpu.memory_space<vmem>>, vector<32x256xf32>,
    %c0_24 = arith.constant 0 : index
    %c2 = arith.constant 2 : index
    %c0_25 = arith.constant 0 : index
    %17 = vector.load %arg7[%c0_24, %c2, %c0_25] : memref<2x18x256xf32, #tpu.memory_space<vmem>>, vector<2x16x256xf32>
    %18 = vector.shape_cast %17 : vector<2x16x256xf32> to vector<32x256xf32>
    %c0_26 = arith.constant 0 : index
    %c512 = arith.constant 512 : index
    %19 = vector.load %arg8[%c0_26, %c512] : memref<32x768xf32, #tpu.memory_space<vmem>>, vector<32x256xf32>
    tpu.vector_store %arg8[%c0_26, %c512], %18 {strides = array<i32>} : memref<32x768xf32, #tpu.memory_space<vmem>>, vector<32x256xf32>,
    %c0_27 = arith.constant 0 : index
    %c0_28 = arith.constant 0 : index
    %20 = vector.load %arg8[%c0_27, %c0_28] : memref<32x768xf32, #tpu.memory_space<vmem>>, vector<32x768xf32>
    %c0_29 = arith.constant 0 : index
    %c0_30 = arith.constant 0 : index
    %21 = vector.load %arg1[%c0_29, %c0_30] : memref<768x128xf32, #tpu.memory_space<vmem>>, vector<768x128xf32>
    %cst_31 = arith.constant dense<0.000000e+00> : vector<32x128xf32>
    %22 = tpu.matmul %20, %21, %cst_31 {dimension_numbers = #tpu.dot_dimension_numbers<[1], [0], [0], [1], [0, 0, 1, 1], [], []>} : vector<32x768xf32>, vector<768x128xf32>, vector<32x128xf32> -> vector<32x128xf32>
    %cst_32 = arith.constant dense<0.000000e+00> : vector<128xf32>
    %23 = vector.multi_reduction <add>, %22, %cst_32 [0] : vector<32x128xf32> to vector<128xf32>
    %24 = vector.shape_cast %23 : vector<128xf32> to vector<1x128xf32>
    %25 = arith.mulf %22, %22 : vector<32x128xf32>
    %cst_33 = arith.constant dense<0.000000e+00> : vector<128xf32>
    %26 = vector.multi_reduction <add>, %25, %cst_33 [0] : vector<32x128xf32> to vector<128xf32>
    %27 = vector.shape_cast %26 : vector<128xf32> to vector<1x128xf32>
    %c0_34 = arith.constant 0 : index
    %c0_35 = arith.constant 0 : index
    %28 = vector.load %arg4[%c0_34, %c0_35] : memref<128x8xf32, #tpu.memory_space<vmem>>, vector<128x8xf32>
    %cst_36 = arith.constant dense<0.000000e+00> : vector<1x8xf32>
    %29 = tpu.matmul %24, %28, %cst_36 {dimension_numbers = #tpu.dot_dimension_numbers<[1], [0], [0], [1], [0, 0, 1, 1], [], []>} : vector<1x128xf32>, vector<128x8xf32>, vector<1x8xf32> -> vector<1x8xf32>
    %cst_37 = arith.constant 0.001953125 : f32
    %30 = vector.broadcast %cst_37 : f32 to vector<1x8xf32>
    %31 = arith.mulf %29, %30 : vector<1x8xf32>
    %c0_38 = arith.constant 0 : index
    %c0_39 = arith.constant 0 : index
    %32 = vector.load %arg4[%c0_38, %c0_39] : memref<128x8xf32, #tpu.memory_space<vmem>>, vector<128x8xf32>
    %cst_40 = arith.constant dense<0.000000e+00> : vector<1x8xf32>
    %33 = tpu.matmul %27, %32, %cst_40 {dimension_numbers = #tpu.dot_dimension_numbers<[1], [0], [0], [1], [0, 0, 1, 1], [], []>} : vector<1x128xf32>, vector<128x8xf32>, vector<1x8xf32> -> vector<1x8xf32>
    %cst_41 = arith.constant 0.001953125 : f32
    %34 = vector.broadcast %cst_41 : f32 to vector<1x8xf32>
    %35 = arith.mulf %33, %34 : vector<1x8xf32>
    %36 = arith.mulf %31, %31 : vector<1x8xf32>
    %37 = arith.subf %35, %36 : vector<1x8xf32>
    %c0_42 = arith.constant 0 : index
    %c0_43 = arith.constant 0 : index
    %38 = vector.load %arg2[%c0_42, %c0_43] : memref<1x8xf32, #tpu.memory_space<vmem>>, vector<1x8xf32>
    %cst_44 = arith.constant 9.99999974E-6 : f32
    %39 = vector.broadcast %cst_44 : f32 to vector<1x8xf32>
    %40 = arith.addf %37, %39 : vector<1x8xf32>
    %41 = math.rsqrt %40 : vector<1x8xf32>
    %42 = arith.mulf %38, %41 : vector<1x8xf32>
    %c0_45 = arith.constant 0 : index
    %c0_46 = arith.constant 0 : index
    %43 = vector.load %arg3[%c0_45, %c0_46] : memref<1x8xf32, #tpu.memory_space<vmem>>, vector<1x8xf32>
    %44 = arith.mulf %31, %42 : vector<1x8xf32>
    %45 = arith.subf %43, %44 : vector<1x8xf32>
    %c0_47 = arith.constant 0 : index
    %c0_48 = arith.constant 0 : index
    %46 = vector.load %arg5[%c0_47, %c0_48] : memref<8x128xf32, #tpu.memory_space<vmem>>, vector<8x128xf32>
    %cst_49 = arith.constant dense<0.000000e+00> : vector<1x128xf32>
    %47 = tpu.matmul %42, %46, %cst_49 {dimension_numbers = #tpu.dot_dimension_numbers<[1], [0], [0], [1], [0, 0, 1, 1], [], []>} : vector<1x8xf32>, vector<8x128xf32>, vector<1x128xf32> -> vector<1x128xf32>
    %c0_50 = arith.constant 0 : index
    %c0_51 = arith.constant 0 : index
    %48 = vector.load %arg5[%c0_50, %c0_51] : memref<8x128xf32, #tpu.memory_space<vmem>>, vector<8x128xf32>
    %cst_52 = arith.constant dense<0.000000e+00> : vector<1x128xf32>
    %49 = tpu.matmul %45, %48, %cst_52 {dimension_numbers = #tpu.dot_dimension_numbers<[1], [0], [0], [1], [0, 0, 1, 1], [], []>} : vector<1x8xf32>, vector<8x128xf32>, vector<1x128xf32> -> vector<1x128xf32>
    %50 = vector.broadcast %47 : vector<1x128xf32> to vector<32x128xf32>
    %51 = arith.mulf %22, %50 : vector<32x128xf32>
    %52 = vector.broadcast %49 : vector<1x128xf32> to vector<32x128xf32>
    %53 = arith.addf %51, %52 : vector<32x128xf32>
    %cst_53 = arith.constant 0.000000e+00 : f32
    %54 = vector.broadcast %cst_53 : f32 to vector<32x128xf32>
    %55 = arith.maximumf %53, %54 : vector<32x128xf32>
    %c0_54 = arith.constant 0 : index
    %c0_55 = arith.constant 0 : index
    %56 = vector.load %arg6[%c0_54, %c0_55] : memref<32x128xf32, #tpu.memory_space<vmem>>, vector<32x128xf32>
    tpu.vector_store %arg6[%c0_54, %c0_55], %55 {strides = array<i32>} : memref<32x128xf32, #tpu.memory_space<vmem>>, vector<32x128xf32>,
    return
  }
}

</mosaic_0001>

<llo_original>
// kernel: tpu_custom_call.1
$region0: #{tpu_custom_call.1}
  #allocation0 [shape = 'u32[]', space=smem, size = 0x4, offset = 0x4, fixed_abs, tag = 'smem constant byte address 0x4 - core index']
  #allocation1 [shape = 'u32[144,128]{1,0:T(1,128)}', space=vmem, size = 0x12000, scoped, tag = 'internal scratch']
  #allocation2 [shape = 'f32[2,18,256]{2,1,0:T(8,128)}', space=vmem, size = 0xc000, scoped, tag = 'scratch operand']
  #allocation3 [shape = 'f32[32,768]{1,0:T(8,128)}', space=vmem, size = 0x18000, scoped, tag = 'scratch operand']
  %s0 = inlined_call_operand.vmem [shape: f32[32,144], index: 0, kind: input, shape index: {}]
  %s1 = inlined_call_operand.hbm [shape: f32[768,128], index: 1, kind: input, shape index: {}]
  %s2 = inlined_call_operand.vmem [shape: f32[1,8], index: 2, kind: input, shape index: {}]
  %s3 = inlined_call_operand.vmem [shape: f32[1,8], index: 3, kind: input, shape index: {}]
  %s4 = inlined_call_operand.vmem [shape: f32[128,8], index: 4, kind: input, shape index: {}]
  %s5 = inlined_call_operand.vmem [shape: f32[8,128], index: 5, kind: input, shape index: {}]
  %s6 = inlined_call_operand.hbm [shape: f32[32,128], index: 6, kind: output, shape index: {}]
  %s7 = sld [smem:[#allocation0]]
  $region38: #{tpu_custom_call.1} parent=0
    _
  %s9 = ssub.s32 1, %s7
  %s10 = scalar_select 0, %s9, %s7
  $region1: #{tpu_custom_call.1} parent=0
    #allocation4 [shape = 'u8[393216]{0}', space=vmem, size = 0x60000, scoped, tag = 'input window, operand 1, single buffered']
    #allocation5 [shape = 's32[1]{0}', space=sflag, size = 0x4, scoped, tag = 'scoped memory for tpu_custom_call.1']
    #allocation6 [shape = 's32[1]{0}', space=sflag, size = 0x4, scoped, tag = 'scoped memory for tpu_custom_call.1']
    #allocation7 [shape = 'u8[16384]{0}', space=vmem, size = 0x4000, scoped, tag = 'output window, operand 0, single buffered']
    %11 = vsyncpa [#allocation5], 0
    %12 = vsyncpa [#allocation6], 0
    // Predicated region
    $region2: #{tpu_custom_call.1} parent=1 // pred_check
      _
    $region3: #{tpu_custom_call.1} parent=1 // pred_check_branch
      %14 = sbr.rel (0) target = $region5
    $region4: #{tpu_custom_call.1} parent=1 // pred_region
      _
    $region5: #{tpu_custom_call.1} parent=1 // pred_fallthru
      _
    // Predicated region
    $region6: #{tpu_custom_call.1} parent=1 // pred_check
      _
    $region7: #{tpu_custom_call.1} parent=1 // pred_check_branch
      %16 = sbr.rel (0) target = $region9
    $region8: #{tpu_custom_call.1} parent=1 // pred_region
      %s18 = ssub.s32 12288, 12288
      %19 = vsyncadd [#allocation5], %s18
      %s20 = sshll.u32 [#allocation4], 4
      %s21 = int_to_ptr.vmem [resolvable:$true] %s20
      %26 = dma.hbm_to_vmem [thread:$0]  %s1, 12288, %s21, [#allocation5], 128, 128, 8
    $region9: #{tpu_custom_call.1} parent=1 // pred_fallthru
      _
    // Predicated region
    $region10: #{tpu_custom_call.1} parent=1 // pred_check
      _
    $region11: #{tpu_custom_call.1} parent=1 // pred_check_branch
      %28 = sbr.rel (0) target = $region13
    $region12: #{tpu_custom_call.1} parent=1 // pred_region
      _
    $region13: #{tpu_custom_call.1} parent=1 // pred_fallthru
      _
    // Predicated region
    $region14: #{tpu_custom_call.1} parent=1 // pred_check
      _
    $region15: #{tpu_custom_call.1} parent=1 // pred_check_branch
      %30 = sbr.rel (0) target = $region17
    $region16: #{tpu_custom_call.1} parent=1 // pred_region
      _
    $region17: #{tpu_custom_call.1} parent=1 // pred_fallthru
      _
    // Predicated region
    $region18: #{tpu_custom_call.1} parent=1 // pred_check
      _
    $region19: #{tpu_custom_call.1} parent=1 // pred_check_branch
      %32 = sbr.rel (0) target = $region21
    $region20: #{tpu_custom_call.1} parent=1 // pred_region
      _
    $region21: #{tpu_custom_call.1} parent=1 // pred_fallthru
      _
    // Predicated region
    $region22: #{tpu_custom_call.1} parent=1 // pred_check
      _
    $region23: #{tpu_custom_call.1} parent=1 // pred_check_branch
      %34 = sbr.rel (0) target = $region25
    $region24: #{tpu_custom_call.1} parent=1 // pred_region
      _
    $region25: #{tpu_custom_call.1} parent=1 // pred_fallthru
      _
    // Predicated region
    $region26: #{tpu_custom_call.1} parent=1 // pred_check
      _
    $region27: #{tpu_custom_call.1} parent=1 // pred_check_branch
      %36 = sbr.rel (0) target = $region29
    $region28: #{tpu_custom_call.1} parent=1 // pred_region
      %37 = dma.done [#allocation5], 12288
    $region29: #{tpu_custom_call.1} parent=1 // pred_fallthru
      _
    %v38 = vld [vmem:[%s0] sm:$0xff]
    %v39 = vld [vmem:[%s0 + $0x8] sm:$0xff]
    %v40 = vld [vmem:[%s0 + $0x10] sm:$0xff]
    %v41 = vld [vmem:[%s0 + $0x18] sm:$0xff]
    %v42 = vld [vmem:[%s0 + $0x20] sm:$0xff]
    %v43 = vld [vmem:[%s0 + $0x28] sm:$0xff]
    %v44 = vld [vmem:[%s0 + $0x30] sm:$0xff]
    %v45 = vld [vmem:[%s0 + $0x38] sm:$0xff]
    %v46 = vlaneseq
    %vm47 = vcmp.ge.s32.totalorder %v46, 0
    %vm48 = vcmp.lt.s32.totalorder %v46, 256
    %vm49 = vmand %vm47, %vm48
    %50 = vst.msk [vmem:[#allocation2] ss:$8 sm:$0x3] %vm49, 0.0
    %51 = vst.msk [vmem:[#allocation2] ss:$8 sm:$0x0] %vm49, 0.0
    %s52 = scalar_lea.vmem [#allocation2], 48
    %53 = vst.msk [vmem:[%s52] ss:$8 sm:$0x3] %vm49, 0.0
    %54 = vst.msk [vmem:[%s52] ss:$8 sm:$0x0] %vm49, 0.0
    %s55 = scalar_lea.vmem [#allocation2], 33
    %56 = vst.msk [vmem:[%s55] ss:$8 sm:$0x3] %vm49, 0.0
    %57 = vst.msk [vmem:[%s55] ss:$8 sm:$0x0] %vm49, 0.0
    %s58 = scalar_lea.vmem [#allocation2], 81
    %59 = vst.msk [vmem:[%s58] ss:$8 sm:$0x3] %vm49, 0.0
    %60 = vst.msk [vmem:[%s58] ss:$8 sm:$0x0] %vm49, 0.0
    %vm61 = vcmask 72704
    %62 = vst.msk [vmem:[#allocation2] sm:$0xff] %vm61, 0.0
    %63 = vst.msk [vmem:[#allocation2 + $0x10] sm:$0xff] %vm61, 0.0
    %vm64 = vcmask 66560
    %65 = vst.msk [vmem:[#allocation2 + $0x20] sm:$0x3] %vm64, 0.0
    %66 = vst.msk [vmem:[#allocation2 + $0x30] sm:$0xff] %vm61, 0.0
    %67 = vst.msk [vmem:[#allocation2 + $0x40] sm:$0xff] %vm61, 0.0
    %68 = vst.msk [vmem:[#allocation2 + $0x50] sm:$0x3] %vm64, 0.0
    %vm69 = vcmask 1047752
    %70 = vst.msk [vmem:[#allocation2 + $0x8] sm:$0xff] %vm69, 0.0
    %71 = vst.msk [vmem:[#allocation2 + $0x18] sm:$0xff] %vm69, 0.0
    %vm72 = vcmask 1041608
    %73 = vst.msk [vmem:[#allocation2 + $0x28] sm:$0x3] %vm72, 0.0
    %74 = vst.msk [vmem:[#allocation2 + $0x38] sm:$0xff] %vm69, 0.0
    %75 = vst.msk [vmem:[#allocation2 + $0x48] sm:$0xff] %vm69, 0.0
    %76 = vst.msk [vmem:[#allocation2 + $0x58] sm:$0x3] %vm72, 0.0
    %vm85 = vcmask 1040384
    %v86 = vrot.slane %v38, 7
    %v87 = vrot.slane %v39, 7
    %v88 = vrot.slane %v40, 7
    %v89 = vsel %vm85, %v86, %v88
    %v90 = vrot.slane %v41, 7
    %v91 = vsel %vm85, %v87, %v90
    %v92 = vrot.slane %v42, 7
    %v93 = vrot.slane %v43, 7
    %v94 = vrot.slane %v44, 7
    %v95 = vsel %vm85, %v92, %v94
    %v96 = vrot.slane %v45, 7
    %v97 = vsel %vm85, %v93, %v96
    %98 = vrot.lane.b32.xlu0 %v86, 9
    %v99 = vpop.permute.xlu0 %98
    %100 = vrot.lane.b32.xlu0 %v87, 9
    %v101 = vpop.permute.xlu0 %100
    %102 = vrot.lane.b32.xlu0 %v89, 9
    %v103 = vpop.permute.xlu0 %102
    %104 = vrot.lane.b32.xlu0 %v91, 9
    %v105 = vpop.permute.xlu0 %104
    %106 = vrot.lane.b32.xlu0 %v88, 9
    %v107 = vpop.permute.xlu0 %106
    %108 = vrot.lane.b32.xlu0 %v90, 9
    %v109 = vpop.permute.xlu0 %108
    %110 = vrot.lane.b32.xlu0 %v92, 9
    %v111 = vpop.permute.xlu0 %110
    %112 = vrot.lane.b32.xlu0 %v93, 9
    %v113 = vpop.permute.xlu0 %112
    %114 = vrot.lane.b32.xlu0 %v95, 9
    %v115 = vpop.permute.xlu0 %114
    %116 = vrot.lane.b32.xlu0 %v97, 9
    %v117 = vpop.permute.xlu0 %116
    %118 = vrot.lane.b32.xlu0 %v94, 9
    %v119 = vpop.permute.xlu0 %118
    %120 = vrot.lane.b32.xlu0 %v96, 9
    %v121 = vpop.permute.xlu0 %120
    %v122 = vsel %vm61, %v99, %v101
    %v123 = vsel %vm61, %v103, %v105
    %v124 = vsel %vm61, %v107, %v109
    %v125 = vsel %vm61, %v111, %v113
    %v126 = vsel %vm61, %v115, %v117
    %v127 = vsel %vm61, %v119, %v121
    %vm140 = vcmask 1047625
    %141 = vst.msk [vmem:[#allocation2] sm:$0xfe] %vm140, %v99
    %vm142 = vcmask 203777
    %143 = vst.msk [vmem:[#allocation2 + $0x8] sm:$0xfe] %vm142, %v122
    %vm144 = vcmask 1047624
    %145 = vst.msk [vmem:[#allocation2 + $0x10] sm:$0xff] %vm144, %v103
    %vm146 = vcmask 203776
    %147 = vst.msk [vmem:[#allocation2 + $0x18] sm:$0xff] %vm146, %v123
    %vm148 = vcmask 1040456
    %149 = vst.msk [vmem:[#allocation2 + $0x20] sm:$0x1] %vm148, %v107
    %vm150 = vcmask 196608
    %151 = vst.msk [vmem:[#allocation2 + $0x28] sm:$0x1] %vm150, %v124
    %152 = vst.msk [vmem:[#allocation2 + $0x30] sm:$0xfe] %vm140, %v111
    %153 = vst.msk [vmem:[#allocation2 + $0x38] sm:$0xfe] %vm142, %v125
    %154 = vst.msk [vmem:[#allocation2 + $0x40] sm:$0xff] %vm144, %v115
    %155 = vst.msk [vmem:[#allocation2 + $0x48] sm:$0xff] %vm146, %v126
    %156 = vst.msk [vmem:[#allocation2 + $0x50] sm:$0x1] %vm148, %v119
    %157 = vst.msk [vmem:[#allocation2 + $0x58] sm:$0x1] %vm150, %v127
    %v158 = vld [vmem:[#allocation2] sm:$0xff]
    %v159 = vld [vmem:[#allocation2 + $0x8] sm:$0xff]
    %v160 = vld [vmem:[#allocation2 + $0x10] sm:$0xff]
    %v161 = vld [vmem:[#allocation2 + $0x18] sm:$0xff]
    %v162 = vld [vmem:[#allocation2 + $0x30] sm:$0xff]
    %v163 = vld [vmem:[#allocation2 + $0x38] sm:$0xff]
    %v164 = vld [vmem:[#allocation2 + $0x40] sm:$0xff]
    %v165 = vld [vmem:[#allocation2 + $0x48] sm:$0xff]
    %166 = vst [vmem:[#allocation3] sm:$0xff] %v158
    %167 = vst [vmem:[#allocation3 + $0x8] sm:$0xff] %v159
    %168 = vst [vmem:[#allocation3 + $0x30] sm:$0xff] %v160
    %169 = vst [vmem:[#allocation3 + $0x38] sm:$0xff] %v161
    %170 = vst [vmem:[#allocation3 + $0x60] sm:$0xff] %v162
    %171 = vst [vmem:[#allocation3 + $0x68] sm:$0xff] %v163
    %172 = vst [vmem:[#allocation3 + $0x90] sm:$0xff] %v164
    %173 = vst [vmem:[#allocation3 + $0x98] sm:$0xff] %v165
    %v174 = vld [vmem:[#allocation2] sm:$0xfe]
    %v175 = vld [vmem:[#allocation2 + $0x8] sm:$0xfe]
    %v176 = vld [vmem:[#allocation2 + $0x10] sm:$0xff]
    %v177 = vld [vmem:[#allocation2 + $0x18] sm:$0xff]
    %v178 = vld [vmem:[#allocation2 + $0x20] sm:$0x1]
    %v179 = vld [vmem:[#allocation2 + $0x28] sm:$0x1]
    %v180 = vld [vmem:[#allocation2 + $0x30] sm:$0xfe]
    %v181 = vld [vmem:[#allocation2 + $0x38] sm:$0xfe]
    %v182 = vld [vmem:[#allocation2 + $0x40] sm:$0xff]
    %v183 = vld [vmem:[#allocation2 + $0x48] sm:$0xff]
    %v184 = vld [vmem:[#allocation2 + $0x50] sm:$0x1]
    %v185 = vld [vmem:[#allocation2 + $0x58] sm:$0x1]
    %vm198 = vcmask 1046528
    %v199 = vrot.slane %v174, 1
    %v200 = vrot.slane %v176, 1
    %v201 = vsel %vm198, %v199, %v200
    %v202 = vrot.slane %v175, 1
    %v203 = vrot.slane %v177, 1
    %v204 = vsel %vm198, %v202, %v203
    %v205 = vrot.slane %v178, 1
    %v206 = vsel %vm198, %v200, %v205
    %v207 = vrot.slane %v179, 1
    %v208 = vsel %vm198, %v203, %v207
    %v209 = vrot.slane %v180, 1
    %v210 = vrot.slane %v182, 1
    %v211 = vsel %vm198, %v209, %v210
    %v212 = vrot.slane %v181, 1
    %v213 = vrot.slane %v183, 1
    %v214 = vsel %vm198, %v212, %v213
    %v215 = vrot.slane %v184, 1
    %v216 = vsel %vm198, %v210, %v215
    %v217 = vrot.slane %v185, 1
    %v218 = vsel %vm198, %v213, %v217
    %227 = vst [vmem:[#allocation3 + $0x10] sm:$0xff] %v201
    %228 = vst [vmem:[#allocation3 + $0x18] sm:$0xff] %v204
    %229 = vst [vmem:[#allocation3 + $0x40] sm:$0xff] %v206
    %230 = vst [vmem:[#allocation3 + $0x48] sm:$0xff] %v208
    %231 = vst [vmem:[#allocation3 + $0x70] sm:$0xff] %v211
    %232 = vst [vmem:[#allocation3 + $0x78] sm:$0xff] %v214
    %233 = vst [vmem:[#allocation3 + $0xa0] sm:$0xff] %v216
    %234 = vst [vmem:[#allocation3 + $0xa8] sm:$0xff] %v218
    %v235 = vld [vmem:[#allocation2] sm:$0xfc]
    %v236 = vld [vmem:[#allocation2 + $0x8] sm:$0xfc]
    %v237 = vld [vmem:[#allocation2 + $0x10] sm:$0xff]
    %v238 = vld [vmem:[#allocation2 + $0x18] sm:$0xff]
    %v239 = vld [vmem:[#allocation2 + $0x20] sm:$0x3]
    %v240 = vld [vmem:[#allocation2 + $0x28] sm:$0x3]
    %v241 = vld [vmem:[#allocation2 + $0x30] sm:$0xfc]
    %v242 = vld [vmem:[#allocation2 + $0x38] sm:$0xfc]
    %v243 = vld [vmem:[#allocation2 + $0x40] sm:$0xff]
    %v244 = vld [vmem:[#allocation2 + $0x48] sm:$0xff]
    %v245 = vld [vmem:[#allocation2 + $0x50] sm:$0x3]
    %v246 = vld [vmem:[#allocation2 + $0x58] sm:$0x3]
    %vm259 = vcmask 1045504
    %v260 = vrot.slane %v235, 2
    %v261 = vrot.slane %v237, 2
    %v262 = vsel %vm259, %v260, %v261
    %v263 = vrot.slane %v236, 2
    %v264 = vrot.slane %v238, 2
    %v265 = vsel %vm259, %v263, %v264
    %v266 = vrot.slane %v239, 2
    %v267 = vsel %vm259, %v261, %v266
    %v268 = vrot.slane %v240, 2
    %v269 = vsel %vm259, %v264, %v268
    %v270 = vrot.slane %v241, 2
    %v271 = vrot.slane %v243, 2
    %v272 = vsel %vm259, %v270, %v271
    %v273 = vrot.slane %v242, 2
    %v274 = vrot.slane %v244, 2
    %v275 = vsel %vm259, %v273, %v274
    %v276 = vrot.slane %v245, 2
    %v277 = vsel %vm259, %v271, %v276
    %v278 = vrot.slane %v246, 2
    %v279 = vsel %vm259, %v274, %v278
    %288 = vst [vmem:[#allocation3 + $0x20] sm:$0xff] %v262
    %289 = vst [vmem:[#allocation3 + $0x28] sm:$0xff] %v265
    %290 = vst [vmem:[#allocation3 + $0x50] sm:$0xff] %v267
    %291 = vst [vmem:[#allocation3 + $0x58] sm:$0xff] %v269
    %292 = vst [vmem:[#allocation3 + $0x80] sm:$0xff] %v272
    %293 = vst [vmem:[#allocation3 + $0x88] sm:$0xff] %v275
    %294 = vst [vmem:[#allocation3 + $0xb0] sm:$0xff] %v277
    %295 = vst [vmem:[#allocation3 + $0xb8] sm:$0xff] %v279
    %v296 = vld [vmem:[#allocation3] sm:$0xff]
    %v297 = vld [vmem:[#allocation3 + $0x8] sm:$0xff]
    %v298 = vld [vmem:[#allocation3 + $0x10] sm:$0xff]
    %v299 = vld [vmem:[#allocation3 + $0x18] sm:$0xff]
    %v300 = vld [vmem:[#allocation3 + $0x20] sm:$0xff]
    %v301 = vld [vmem:[#allocation3 + $0x28] sm:$0xff]
    %v302 = vld [vmem:[#allocation3 + $0x30] sm:$0xff]
    %v303 = vld [vmem:[#allocation3 + $0x38] sm:$0xff]
    %v304 = vld [vmem:[#allocation3 + $0x40] sm:$0xff]
    %v305 = vld [vmem:[#allocation3 + $0x48] sm:$0xff]
    %v306 = vld [vmem:[#allocation3 + $0x50] sm:$0xff]
    %v307 = vld [vmem:[#allocation3 + $0x58] sm:$0xff]
    %v308 = vld [vmem:[#allocation3 + $0x60] sm:$0xff]
    %v309 = vld [vmem:[#allocation3 + $0x68] sm:$0xff]
    %v310 = vld [vmem:[#allocation3 + $0x70] sm:$0xff]
    %v311 = vld [vmem:[#allocation3 + $0x78] sm:$0xff]
    %v312 = vld [vmem:[#allocation3 + $0x80] sm:$0xff]
    %v313 = vld [vmem:[#allocation3 + $0x88] sm:$0xff]
    %v314 = vld [vmem:[#allocation3 + $0x90] sm:$0xff]
    %v315 = vld [vmem:[#allocation3 + $0x98] sm:$0xff]
    %v316 = vld [vmem:[#allocation3 + $0xa0] sm:$0xff]
    %v317 = vld [vmem:[#allocation3 + $0xa8] sm:$0xff]
    %v318 = vld [vmem:[#allocation3 + $0xb0] sm:$0xff]
    %v319 = vld [vmem:[#allocation3 + $0xb8] sm:$0xff]
    %v320 = vld [vmem:[#allocation4] sm:$0xff]
    %v321 = vld [vmem:[#allocation4 + $0x8] sm:$0xff]
    %v322 = vld [vmem:[#allocation4 + $0x10] sm:$0xff]
    %v323 = vld [vmem:[#allocation4 + $0x18] sm:$0xff]
    %v324 = vld [vmem:[#allocation4 + $0x20] sm:$0xff]
    %v325 = vld [vmem:[#allocation4 + $0x28] sm:$0xff]
    %v326 = vld [vmem:[#allocation4 + $0x30] sm:$0xff]
    %v327 = vld [vmem:[#allocation4 + $0x38] sm:$0xff]
    %v328 = vld [vmem:[#allocation4 + $0x40] sm:$0xff]
    %v329 = vld [vmem:[#allocation4 + $0x48] sm:$0xff]
    %v330 = vld [vmem:[#allocation4 + $0x50] sm:$0xff]
    %v331 = vld [vmem:[#allocation4 + $0x58] sm:$0xff]
    %v332 = vld [vmem:[#allocation4 + $0x60] sm:$0xff]
    %v333 = vld [vmem:[#allocation4 + $0x68] sm:$0xff]
    %v334 = vld [vmem:[#allocation4 + $0x70] sm:$0xff]
    %v335 = vld [vmem:[#allocation4 + $0x78] sm:$0xff]
    %v336 = vld [vmem:[#allocation4 + $0x80] sm:$0xff]
    %v337 = vld [vmem:[#allocation4 + $0x88] sm:$0xff]
    %v338 = vld [vmem:[#allocation4 + $0x90] sm:$0xff]
    %v339 = vld [vmem:[#allocation4 + $0x98] sm:$0xff]
    %v340 = vld [vmem:[#allocation4 + $0xa0] sm:$0xff]
    %v341 = vld [vmem:[#allocation4 + $0xa8] sm:$0xff]
    %v342 = vld [vmem:[#allocation4 + $0xb0] sm:$0xff]
    %v343 = vld [vmem:[#allocation4 + $0xb8] sm:$0xff]
    %v344 = vld [vmem:[#allocation4 + $0xc0] sm:$0xff]
    %v345 = vld [vmem:[#allocation4 + $0xc8] sm:$0xff]
    %v346 = vld [vmem:[#allocation4 + $0xd0] sm:$0xff]
    %v347 = vld [vmem:[#allocation4 + $0xd8] sm:$0xff]
    %v348 = vld [vmem:[#allocation4 + $0xe0] sm:$0xff]
    %v349 = vld [vmem:[#allocation4 + $0xe8] sm:$0xff]
    %v350 = vld [vmem:[#allocation4 + $0xf0] sm:$0xff]
    %v351 = vld [vmem:[#allocation4 + $0xf8] sm:$0xff]
    %v352 = vld [vmem:[#allocation4 + $0x100] sm:$0xff]
    %v353 = vld [vmem:[#allocation4 + $0x108] sm:$0xff]
    %v354 = vld [vmem:[#allocation4 + $0x110] sm:$0xff]
    %v355 = vld [vmem:[#allocation4 + $0x118] sm:$0xff]
    %v356 = vld [vmem:[#allocation4 + $0x120] sm:$0xff]
    %v357 = vld [vmem:[#allocation4 + $0x128] sm:$0xff]
    %v358 = vld [vmem:[#allocation4 + $0x130] sm:$0xff]
    %v359 = vld [vmem:[#allocation4 + $0x138] sm:$0xff]
    %v360 = vld [vmem:[#allocation4 + $0x140] sm:$0xff]
    %v361 = vld [vmem:[#allocation4 + $0x148] sm:$0xff]
    %v362 = vld [vmem:[#allocation4 + $0x150] sm:$0xff]
    %v363 = vld [vmem:[#allocation4 + $0x158] sm:$0xff]
    %v364 = vld [vmem:[#allocation4 + $0x160] sm:$0xff]
    %v365 = vld [vmem:[#allocation4 + $0x168] sm:$0xff]
    %v366 = vld [vmem:[#allocation4 + $0x170] sm:$0xff]
    %v367 = vld [vmem:[#allocation4 + $0x178] sm:$0xff]
    %v368 = vld [vmem:[#allocation4 + $0x180] sm:$0xff]
    %v369 = vld [vmem:[#allocation4 + $0x188] sm:$0xff]
    %v370 = vld [vmem:[#allocation4 + $0x190] sm:$0xff]
    %v371 = vld [vmem:[#allocation4 + $0x198] sm:$0xff]
    %v372 = vld [vmem:[#allocation4 + $0x1a0] sm:$0xff]
    %v373 = vld [vmem:[#allocation4 + $0x1a8] sm:$0xff]
    %v374 = vld [vmem:[#allocation4 + $0x1b0] sm:$0xff]
    %v375 = vld [vmem:[#allocation4 + $0x1b8] sm:$0xff]
    %v376 = vld [vmem:[#allocation4 + $0x1c0] sm:$0xff]
    %v377 = vld [vmem:[#allocation4 + $0x1c8] sm:$0xff]
    %v378 = vld [vmem:[#allocation4 + $0x1d0] sm:$0xff]
    %v379 = vld [vmem:[#allocation4 + $0x1d8] sm:$0xff]
    %v380 = vld [vmem:[#allocation4 + $0x1e0] sm:$0xff]
    %v381 = vld [vmem:[#allocation4 + $0x1e8] sm:$0xff]
    %v382 = vld [vmem:[#allocation4 + $0x1f0] sm:$0xff]
    %v383 = vld [vmem:[#allocation4 + $0x1f8] sm:$0xff]
    %v384 = vld [vmem:[#allocation4 + $0x200] sm:$0xff]
    %v385 = vld [vmem:[#allocation4 + $0x208] sm:$0xff]
    %v386 = vld [vmem:[#allocation4 + $0x210] sm:$0xff]
    %v387 = vld [vmem:[#allocation4 + $0x218] sm:$0xff]
    %v388 = vld [vmem:[#allocation4 + $0x220] sm:$0xff]
    %v389 = vld [vmem:[#allocation4 + $0x228] sm:$0xff]
    %v390 = vld [vmem:[#allocation4 + $0x230] sm:$0xff]
    %v391 = vld [vmem:[#allocation4 + $0x238] sm:$0xff]
    %v392 = vld [vmem:[#allocation4 + $0x240] sm:$0xff]
    %v393 = vld [vmem:[#allocation4 + $0x248] sm:$0xff]
    %v394 = vld [vmem:[#allocation4 + $0x250] sm:$0xff]
    %v395 = vld [vmem:[#allocation4 + $0x258] sm:$0xff]
    %v396 = vld [vmem:[#allocation4 + $0x260] sm:$0xff]
    %v397 = vld [vmem:[#allocation4 + $0x268] sm:$0xff]
    %v398 = vld [vmem:[#allocation4 + $0x270] sm:$0xff]
    %v399 = vld [vmem:[#allocation4 + $0x278] sm:$0xff]
    %v400 = vld [vmem:[#allocation4 + $0x280] sm:$0xff]
    %v401 = vld [vmem:[#allocation4 + $0x288] sm:$0xff]
    %v402 = vld [vmem:[#allocation4 + $0x290] sm:$0xff]
    %v403 = vld [vmem:[#allocation4 + $0x298] sm:$0xff]
    %v404 = vld [vmem:[#allocation4 + $0x2a0] sm:$0xff]
    %v405 = vld [vmem:[#allocation4 + $0x2a8] sm:$0xff]
    %v406 = vld [vmem:[#allocation4 + $0x2b0] sm:$0xff]
    %v407 = vld [vmem:[#allocation4 + $0x2b8] sm:$0xff]
    %v408 = vld [vmem:[#allocation4 + $0x2c0] sm:$0xff]
    %v409 = vld [vmem:[#allocation4 + $0x2c8] sm:$0xff]
    %v410 = vld [vmem:[#allocation4 + $0x2d0] sm:$0xff]
    %v411 = vld [vmem:[#allocation4 + $0x2d8] sm:$0xff]
    %v412 = vld [vmem:[#allocation4 + $0x2e0] sm:$0xff]
    %v413 = vld [vmem:[#allocation4 + $0x2e8] sm:$0xff]
    %v414 = vld [vmem:[#allocation4 + $0x2f0] sm:$0xff]
    %v415 = vld [vmem:[#allocation4 + $0x2f8] sm:$0xff]
    %416 = vmatprep.subr.mxu0 0.0
    %417 = vmatpush1.msra.mxu0 %v320
    %418 = vmatprep.subr.mxu0 0.0
    %419 = vmatpush1.msra.mxu0 %v321
    %420 = vmatprep.subr.mxu0 0.0
    %421 = vmatpush1.msra.mxu0 %v322
    %422 = vmatprep.subr.mxu0 0.0
    %423 = vmatpush1.msra.mxu0 %v323
    %424 = vmatprep.subr.mxu0 0.0
    %425 = vmatpush1.msra.mxu0 %v324
    %426 = vmatprep.subr.mxu0 0.0
    %427 = vmatpush1.msra.mxu0 %v325
    %428 = vmatprep.subr.mxu0 0.0
    %429 = vmatpush1.msra.mxu0 %v326
    %430 = vmatprep.subr.mxu0 0.0
    %431 = vmatpush1.msra.mxu0 %v327
    %432 = vmatprep.subr.mxu0 0.0
    %433 = vmatpush1.msra.mxu0 %v328
    %434 = vmatprep.subr.mxu0 0.0
    %435 = vmatpush1.msra.mxu0 %v329
    %436 = vmatprep.subr.mxu0 0.0
    %437 = vmatpush1.msra.mxu0 %v330
    %438 = vmatprep.subr.mxu0 0.0
    %439 = vmatpush1.msra.mxu0 %v331
    %440 = vmatprep.subr.mxu0 0.0
    %441 = vmatpush1.msra.mxu0 %v332
    %442 = vmatprep.subr.mxu0 0.0
    %443 = vmatpush1.msra.mxu0 %v333
    %444 = vmatprep.subr.mxu0 0.0
    %445 = vmatpush1.msra.mxu0 %v334
    %446 = vmatprep.subr.mxu0 0.0
    %447 = vmatpush1.msra.mxu0 %v335
    %448 = vmatprep.subr.mxu0 0.0
    %449 = vmatpush1.msra.mxu0 %v336
    %450 = vmatprep.subr.mxu0 0.0
    %451 = vmatpush1.msra.mxu0 %v337
    %452 = vmatprep.subr.mxu0 0.0
    %453 = vmatpush1.msra.mxu0 %v338
    %454 = vmatprep.subr.mxu0 0.0
    %455 = vmatpush1.msra.mxu0 %v339
    %456 = vmatprep.subr.mxu0 0.0
    %457 = vmatpush1.msra.mxu0 %v340
    %458 = vmatprep.subr.mxu0 0.0
    %459 = vmatpush1.msra.mxu0 %v341
    %460 = vmatprep.subr.mxu0 0.0
    %461 = vmatpush1.msra.mxu0 %v342
    %462 = vmatprep.subr.mxu0 0.0
    %463 = vmatpush1.msra.mxu0 %v343
    %464 = vmatprep.subr.mxu0 0.0
    %465 = vmatpush1.msra.mxu0 %v344
    %466 = vmatprep.subr.mxu0 0.0
    %467 = vmatpush1.msra.mxu0 %v345
    %468 = vmatprep.subr.mxu0 0.0
    %469 = vmatpush1.msra.mxu0 %v346
    %470 = vmatprep.subr.mxu0 0.0
    %471 = vmatpush1.msra.mxu0 %v347
    %472 = vmatprep.subr.mxu0 0.0
    %473 = vmatpush1.msra.mxu0 %v348
    %474 = vmatprep.subr.mxu0 0.0
    %475 = vmatpush1.msra.mxu0 %v349
    %476 = vmatprep.subr.mxu0 0.0
    %477 = vmatpush1.msra.mxu0 %v350
    %478 = vmatprep.subr.mxu0 0.0
    %479 = vmatpush1.msra.mxu0 %v351
    %480 = vmatprep.mubr.f32.mxu0 %v297
    %481 = vmatmul.mubr.f32.gmra.mrb[0].mxu0 %v296
    %v482 = vpop.f32.mrb[0].mxu0
    %v483 = vadd.f32 0.0, %v482
    %v484 = vpop.f32.mrb[0].mxu0
    %485 = vmatprep.mubr.f32.mxu0 %v303
    %486 = vmatmul.mubr.f32.gmra.mrb[0].mxu0 %v302
    %v487 = vpop.f32.mrb[0].mxu0
    %v488 = vadd.f32 0.0, %v487
    %v489 = vpop.f32.mrb[0].mxu0
    %490 = vmatprep.mubr.f32.mxu0 %v309
    %491 = vmatmul.mubr.f32.gmra.mrb[0].mxu0 %v308
    %v492 = vpop.f32.mrb[0].mxu0
    %v493 = vadd.f32 0.0, %v492
    %v494 = vpop.f32.mrb[0].mxu0
    %495 = vmatprep.mubr.f32.mxu0 %v315
    %496 = vmatmul.mubr.f32.gmra.mrb[0].mxu0 %v314
    %v497 = vpop.f32.mrb[0].mxu0
    %v498 = vadd.f32 0.0, %v497
    %v499 = vpop.f32.mrb[0].mxu0
    %500 = vdwg.mxu0
    %501 = vmatprep.subr.mxu0 0.0
    %502 = vmatpush1.msra.mxu0 %v352
    %503 = vmatprep.subr.mxu0 0.0
    %504 = vmatpush1.msra.mxu0 %v353
    %505 = vmatprep.subr.mxu0 0.0
    %506 = vmatpush1.msra.mxu0 %v354
    %507 = vmatprep.subr.mxu0 0.0
    %508 = vmatpush1.msra.mxu0 %v355
    %509 = vmatprep.subr.mxu0 0.0
    %510 = vmatpush1.msra.mxu0 %v356
    %511 = vmatprep.subr.mxu0 0.0
    %512 = vmatpush1.msra.mxu0 %v357
    %513 = vmatprep.subr.mxu0 0.0
    %514 = vmatpush1.msra.mxu0 %v358
    %515 = vmatprep.subr.mxu0 0.0
    %516 = vmatpush1.msra.mxu0 %v359
    %517 = vmatprep.subr.mxu0 0.0
    %518 = vmatpush1.msra.mxu0 %v360
    %519 = vmatprep.subr.mxu0 0.0
    %520 = vmatpush1.msra.mxu0 %v361
    %521 = vmatprep.subr.mxu0 0.0
    %522 = vmatpush1.msra.mxu0 %v362
    %523 = vmatprep.subr.mxu0 0.0
    %524 = vmatpush1.msra.mxu0 %v363
    %525 = vmatprep.subr.mxu0 0.0
    %526 = vmatpush1.msra.mxu0 %v364
    %527 = vmatprep.subr.mxu0 0.0
    %528 = vmatpush1.msra.mxu0 %v365
    %529 = vmatprep.subr.mxu0 0.0
    %530 = vmatpush1.msra.mxu0 %v366
    %531 = vmatprep.subr.mxu0 0.0
    %532 = vmatpush1.msra.mxu0 %v367
    %533 = vmatprep.subr.mxu0 0.0
    %534 = vmatpush1.msra.mxu0 %v368
    %535 = vmatprep.subr.mxu0 0.0
    %536 = vmatpush1.msra.mxu0 %v369
    %537 = vmatprep.subr.mxu0 0.0
    %538 = vmatpush1.msra.mxu0 %v370
    %539 = vmatprep.subr.mxu0 0.0
    %540 = vmatpush1.msra.mxu0 %v371
    %541 = vmatprep.subr.mxu0 0.0
    %542 = vmatpush1.msra.mxu0 %v372
    %543 = vmatprep.subr.mxu0 0.0
    %544 = vmatpush1.msra.mxu0 %v373
    %545 = vmatprep.subr.mxu0 0.0
    %546 = vmatpush1.msra.mxu0 %v374
    %547 = vmatprep.subr.mxu0 0.0
    %548 = vmatpush1.msra.mxu0 %v375
    %549 = vmatprep.subr.mxu0 0.0
    %550 = vmatpush1.msra.mxu0 %v376
    %551 = vmatprep.subr.mxu0 0.0
    %552 = vmatpush1.msra.mxu0 %v377
    %553 = vmatprep.subr.mxu0 0.0
    %554 = vmatpush1.msra.mxu0 %v378
    %555 = vmatprep.subr.mxu0 0.0
    %556 = vmatpush1.msra.mxu0 %v379
    %557 = vmatprep.subr.mxu0 0.0
    %558 = vmatpush1.msra.mxu0 %v380
    %559 = vmatprep.subr.mxu0 0.0
    %560 = vmatpush1.msra.mxu0 %v381
    %561 = vmatprep.subr.mxu0 0.0
    %562 = vmatpush1.msra.mxu0 %v382
    %563 = vmatprep.subr.mxu0 0.0
    %564 = vmatpush1.msra.mxu0 %v383
    %565 = vmatprep.mubr.f32.mxu0 %v299
    %566 = vmatmul.mubr.f32.gmra.mrb[0].mxu0 %v298
    %v567 = vpop.f32.mrb[0].mxu0
    %v568 = vadd.f32 %v483, %v567
    %v569 = vpop.f32.mrb[0].mxu0
    %570 = vmatprep.mubr.f32.mxu0 %v305
    %571 = vmatmul.mubr.f32.gmra.mrb[0].mxu0 %v304
    %v572 = vpop.f32.mrb[0].mxu0
    %v573 = vadd.f32 %v488, %v572
    %v574 = vpop.f32.mrb[0].mxu0
    %575 = vmatprep.mubr.f32.mxu0 %v311
    %576 = vmatmul.mubr.f32.gmra.mrb[0].mxu0 %v310
    %v577 = vpop.f32.mrb[0].mxu0
    %v578 = vadd.f32 %v493, %v577
    %v579 = vpop.f32.mrb[0].mxu0
    %580 = vmatprep.mubr.f32.mxu0 %v317
    %581 = vmatmul.mubr.f32.gmra.mrb[0].mxu0 %v316
    %v582 = vpop.f32.mrb[0].mxu0
    %v583 = vadd.f32 %v498, %v582
    %v584 = vpop.f32.mrb[0].mxu0
    %585 = vdwg.mxu0
    %586 = vmatprep.subr.mxu0 0.0
    %587 = vmatpush1.msra.mxu0 %v384
    %588 = vmatprep.subr.mxu0 0.0
    %589 = vmatpush1.msra.mxu0 %v385
    %590 = vmatprep.subr.mxu0 0.0
    %591 = vmatpush1.msra.mxu0 %v386
    %592 = vmatprep.subr.mxu0 0.0
    %593 = vmatpush1.msra.mxu0 %v387
    %594 = vmatprep.subr.mxu0 0.0
    %595 = vmatpush1.msra.mxu0 %v388
    %596 = vmatprep.subr.mxu0 0.0
    %597 = vmatpush1.msra.mxu0 %v389
    %598 = vmatprep.subr.mxu0 0.0
    %599 = vmatpush1.msra.mxu0 %v390
    %600 = vmatprep.subr.mxu0 0.0
    %601 = vmatpush1.msra.mxu0 %v391
    %602 = vmatprep.subr.mxu0 0.0
    %603 = vmatpush1.msra.mxu0 %v392
    %604 = vmatprep.subr.mxu0 0.0
    %605 = vmatpush1.msra.mxu0 %v393
    %606 = vmatprep.subr.mxu0 0.0
    %607 = vmatpush1.msra.mxu0 %v394
    %608 = vmatprep.subr.mxu0 0.0
    %609 = vmatpush1.msra.mxu0 %v395
    %610 = vmatprep.subr.mxu0 0.0
    %611 = vmatpush1.msra.mxu0 %v396
    %612 = vmatprep.subr.mxu0 0.0
    %613 = vmatpush1.msra.mxu0 %v397
    %614 = vmatprep.subr.mxu0 0.0
    %615 = vmatpush1.msra.mxu0 %v398
    %616 = vmatprep.subr.mxu0 0.0
    %617 = vmatpush1.msra.mxu0 %v399
    %618 = vmatprep.subr.mxu0 0.0
    %619 = vmatpush1.msra.mxu0 %v400
    %620 = vmatprep.subr.mxu0 0.0
    %621 = vmatpush1.msra.mxu0 %v401
    %622 = vmatprep.subr.mxu0 0.0
    %623 = vmatpush1.msra.mxu0 %v402
    %624 = vmatprep.subr.mxu0 0.0
    %625 = vmatpush1.msra.mxu0 %v403
    %626 = vmatprep.subr.mxu0 0.0
    %627 = vmatpush1.msra.mxu0 %v404
    %628 = vmatprep.subr.mxu0 0.0
    %629 = vmatpush1.msra.mxu0 %v405
    %630 = vmatprep.subr.mxu0 0.0
    %631 = vmatpush1.msra.mxu0 %v406
    %632 = vmatprep.subr.mxu0 0.0
    %633 = vmatpush1.msra.mxu0 %v407
    %634 = vmatprep.subr.mxu0 0.0
    %635 = vmatpush1.msra.mxu0 %v408
    %636 = vmatprep.subr.mxu0 0.0
    %637 = vmatpush1.msra.mxu0 %v409
    %638 = vmatprep.subr.mxu0 0.0
    %639 = vmatpush1.msra.mxu0 %v410
    %640 = vmatprep.subr.mxu0 0.0
    %641 = vmatpush1.msra.mxu0 %v411
    %642 = vmatprep.subr.mxu0 0.0
    %643 = vmatpush1.msra.mxu0 %v412
    %644 = vmatprep.subr.mxu0 0.0
    %645 = vmatpush1.msra.mxu0 %v413
    %646 = vmatprep.subr.mxu0 0.0
    %647 = vmatpush1.msra.mxu0 %v414
    %648 = vmatprep.subr.mxu0 0.0
    %649 = vmatpush1.msra.mxu0 %v415
    %650 = vmatprep.mubr.f32.mxu0 %v301
    %651 = vmatmul.mubr.f32.gmra.mrb[0].mxu0 %v300
    %v652 = vpop.f32.mrb[0].mxu0
    %v653 = vadd.f32 %v568, %v652
    %v654 = vpop.f32.mrb[0].mxu0
    %655 = vmatprep.mubr.f32.mxu0 %v307
    %656 = vmatmul.mubr.f32.gmra.mrb[0].mxu0 %v306
    %v657 = vpop.f32.mrb[0].mxu0
    %v658 = vadd.f32 %v573, %v657
    %v659 = vpop.f32.mrb[0].mxu0
    %660 = vmatprep.mubr.f32.mxu0 %v313
    %661 = vmatmul.mubr.f32.gmra.mrb[0].mxu0 %v312
    %v662 = vpop.f32.mrb[0].mxu0
    %v663 = vadd.f32 %v578, %v662
    %v664 = vpop.f32.mrb[0].mxu0
    %665 = vmatprep.mubr.f32.mxu0 %v319
    %666 = vmatmul.mubr.f32.gmra.mrb[0].mxu0 %v318
    %v667 = vpop.f32.mrb[0].mxu0
    %v668 = vadd.f32 %v583, %v667
    %v669 = vpop.f32.mrb[0].mxu0
    %670 = vdwg.mxu0
    %v671 = vadd.f32 %v653, %v658
    %v672 = vadd.f32 %v671, %v663
    %v673 = vadd.f32 %v672, %v668
    %v674 = vrot.slane %v673, 4
    %v675 = vadd.f32 %v673, %v674
    %v676 = vrot.slane %v675, 2
    %v677 = vadd.f32 %v675, %v676
    %v678 = vrot.slane %v677, 1
    %v679 = vadd.f32 %v677, %v678
    %v680 = vmul.f32 %v653, %v653
    %v681 = vmul.f32 %v658, %v658
    %v682 = vmul.f32 %v663, %v663
    %v683 = vmul.f32 %v668, %v668
    %v684 = vadd.f32 %v680, %v681
    %v685 = vadd.f32 %v684, %v682
    %v686 = vadd.f32 %v685, %v683
    %v687 = vrot.slane %v686, 4
    %v688 = vadd.f32 %v686, %v687
    %v689 = vrot.slane %v688, 2
    %v690 = vadd.f32 %v688, %v689
    %v691 = vrot.slane %v690, 1
    %v692 = vadd.f32 %v690, %v691
    %v693 = vld [vmem:[%s4] sm:$0xff]
    %v694 = vld [vmem:[%s4 + $0x8] sm:$0xff]
    %v695 = vld [vmem:[%s4 + $0x10] sm:$0xff]
    %v696 = vld [vmem:[%s4 + $0x18] sm:$0xff]
    %v697 = vld [vmem:[%s4 + $0x20] sm:$0xff]
    %v698 = vld [vmem:[%s4 + $0x28] sm:$0xff]
    %v699 = vld [vmem:[%s4 + $0x30] sm:$0xff]
    %v700 = vld [vmem:[%s4 + $0x38] sm:$0xff]
    %v701 = vld [vmem:[%s4 + $0x40] sm:$0xff]
    %v702 = vld [vmem:[%s4 + $0x48] sm:$0xff]
    %v703 = vld [vmem:[%s4 + $0x50] sm:$0xff]
    %v704 = vld [vmem:[%s4 + $0x58] sm:$0xff]
    %v705 = vld [vmem:[%s4 + $0x60] sm:$0xff]
    %v706 = vld [vmem:[%s4 + $0x68] sm:$0xff]
    %v707 = vld [vmem:[%s4 + $0x70] sm:$0xff]
    %v708 = vld [vmem:[%s4 + $0x78] sm:$0xff]
    %709 = vmatprep.subr.mxu0 0.0
    %710 = vmatpush1.msra.mxu0 %v693
    %711 = vmatprep.subr.mxu0 0.0
    %712 = vmatpush1.msra.mxu0 %v694
    %713 = vmatprep.subr.mxu0 0.0
    %714 = vmatpush1.msra.mxu0 %v695
    %715 = vmatprep.subr.mxu0 0.0
    %716 = vmatpush1.msra.mxu0 %v696
    %717 = vmatprep.subr.mxu0 0.0
    %718 = vmatpush1.msra.mxu0 %v697
    %719 = vmatprep.subr.mxu0 0.0
    %720 = vmatpush1.msra.mxu0 %v698
    %721 = vmatprep.subr.mxu0 0.0
    %722 = vmatpush1.msra.mxu0 %v699
    %723 = vmatprep.subr.mxu0 0.0
    %724 = vmatpush1.msra.mxu0 %v700
    %725 = vmatprep.subr.mxu0 0.0
    %726 = vmatpush1.msra.mxu0 %v701
    %727 = vmatprep.subr.mxu0 0.0
    %728 = vmatpush1.msra.mxu0 %v702
    %729 = vmatprep.subr.mxu0 0.0
    %730 = vmatpush1.msra.mxu0 %v703
    %731 = vmatprep.subr.mxu0 0.0
    %732 = vmatpush1.msra.mxu0 %v704
    %733 = vmatprep.subr.mxu0 0.0
    %734 = vmatpush1.msra.mxu0 %v705
    %735 = vmatprep.subr.mxu0 0.0
    %736 = vmatpush1.msra.mxu0 %v706
    %737 = vmatprep.subr.mxu0 0.0
    %738 = vmatpush1.msra.mxu0 %v707
    %739 = vmatprep.subr.mxu0 0.0
    %740 = vmatpush1.msra.mxu0 %v708
    %741 = vmatprep.subr.mxu0 0.0
    %742 = vmatpush1.msra.mxu0 0.0
    %743 = vmatprep.subr.mxu0 0.0
    %744 = vmatpush1.msra.mxu0 0.0
    %745 = vmatprep.subr.mxu0 0.0
    %746 = vmatpush1.msra.mxu0 0.0
    %747 = vmatprep.subr.mxu0 0.0
    %748 = vmatpush1.msra.mxu0 0.0
    %749 = vmatprep.subr.mxu0 0.0
    %750 = vmatpush1.msra.mxu0 0.0
    %751 = vmatprep.subr.mxu0 0.0
    %752 = vmatpush1.msra.mxu0 0.0
    %753 = vmatprep.subr.mxu0 0.0
    %754 = vmatpush1.msra.mxu0 0.0
    %755 = vmatprep.subr.mxu0 0.0
    %756 = vmatpush1.msra.mxu0 0.0
    %757 = vmatprep.subr.mxu0 0.0
    %758 = vmatpush1.msra.mxu0 0.0
    %759 = vmatprep.subr.mxu0 0.0
    %760 = vmatpush1.msra.mxu0 0.0
    %761 = vmatprep.subr.mxu0 0.0
    %762 = vmatpush1.msra.mxu0 0.0
    %763 = vmatprep.subr.mxu0 0.0
    %764 = vmatpush1.msra.mxu0 0.0
    %765 = vmatprep.subr.mxu0 0.0
    %766 = vmatpush1.msra.mxu0 0.0
    %767 = vmatprep.subr.mxu0 0.0
    %768 = vmatpush1.msra.mxu0 0.0
    %769 = vmatprep.subr.mxu0 0.0
    %770 = vmatpush1.msra.mxu0 0.0
    %771 = vmatprep.subr.mxu0 0.0
    %772 = vmatpush1.msra.mxu0 0.0
    %773 = vmatprep.mubr.f32.mxu0 0.0
    %774 = vmatmul.mubr.f32.gmra.mrb[0].mxu0 %v679
    %v775 = vpop.f32.mrb[0].mxu0
    %v776 = vadd.f32 0.0, %v775
    %v777 = vpop.f32.mrb[0].mxu0
    %778 = vdwg.mxu0
    %v779 = vmul.f32 %v776, 0.001953125
    %780 = vmatprep.subr.mxu0 0.0
    %781 = vmatpush1.msra.mxu0 %v693
    %782 = vmatprep.subr.mxu0 0.0
    %783 = vmatpush1.msra.mxu0 %v694
    %784 = vmatprep.subr.mxu0 0.0
    %785 = vmatpush1.msra.mxu0 %v695
    %786 = vmatprep.subr.mxu0 0.0
    %787 = vmatpush1.msra.mxu0 %v696
    %788 = vmatprep.subr.mxu0 0.0
    %789 = vmatpush1.msra.mxu0 %v697
    %790 = vmatprep.subr.mxu0 0.0
    %791 = vmatpush1.msra.mxu0 %v698
    %792 = vmatprep.subr.mxu0 0.0
    %793 = vmatpush1.msra.mxu0 %v699
    %794 = vmatprep.subr.mxu0 0.0
    %795 = vmatpush1.msra.mxu0 %v700
    %796 = vmatprep.subr.mxu0 0.0
    %797 = vmatpush1.msra.mxu0 %v701
    %798 = vmatprep.subr.mxu0 0.0
    %799 = vmatpush1.msra.mxu0 %v702
    %800 = vmatprep.subr.mxu0 0.0
    %801 = vmatpush1.msra.mxu0 %v703
    %802 = vmatprep.subr.mxu0 0.0
    %803 = vmatpush1.msra.mxu0 %v704
    %804 = vmatprep.subr.mxu0 0.0
    %805 = vmatpush1.msra.mxu0 %v705
    %806 = vmatprep.subr.mxu0 0.0
    %807 = vmatpush1.msra.mxu0 %v706
    %808 = vmatprep.subr.mxu0 0.0
    %809 = vmatpush1.msra.mxu0 %v707
    %810 = vmatprep.subr.mxu0 0.0
    %811 = vmatpush1.msra.mxu0 %v708
    %812 = vmatprep.subr.mxu0 0.0
    %813 = vmatpush1.msra.mxu0 0.0
    %814 = vmatprep.subr.mxu0 0.0
    %815 = vmatpush1.msra.mxu0 0.0
    %816 = vmatprep.subr.mxu0 0.0
    %817 = vmatpush1.msra.mxu0 0.0
    %818 = vmatprep.subr.mxu0 0.0
    %819 = vmatpush1.msra.mxu0 0.0
    %820 = vmatprep.subr.mxu0 0.0
    %821 = vmatpush1.msra.mxu0 0.0
    %822 = vmatprep.subr.mxu0 0.0
    %823 = vmatpush1.msra.mxu0 0.0
    %824 = vmatprep.subr.mxu0 0.0
    %825 = vmatpush1.msra.mxu0 0.0
    %826 = vmatprep.subr.mxu0 0.0
    %827 = vmatpush1.msra.mxu0 0.0
    %828 = vmatprep.subr.mxu0 0.0
    %829 = vmatpush1.msra.mxu0 0.0
    %830 = vmatprep.subr.mxu0 0.0
    %831 = vmatpush1.msra.mxu0 0.0
    %832 = vmatprep.subr.mxu0 0.0
    %833 = vmatpush1.msra.mxu0 0.0
    %834 = vmatprep.subr.mxu0 0.0
    %835 = vmatpush1.msra.mxu0 0.0
    %836 = vmatprep.subr.mxu0 0.0
    %837 = vmatpush1.msra.mxu0 0.0
    %838 = vmatprep.subr.mxu0 0.0
    %839 = vmatpush1.msra.mxu0 0.0
    %840 = vmatprep.subr.mxu0 0.0
    %841 = vmatpush1.msra.mxu0 0.0
    %842 = vmatprep.subr.mxu0 0.0
    %843 = vmatpush1.msra.mxu0 0.0
    %844 = vmatprep.mubr.f32.mxu0 0.0
    %845 = vmatmul.mubr.f32.gmra.mrb[0].mxu0 %v692
    %v846 = vpop.f32.mrb[0].mxu0
    %v847 = vadd.f32 0.0, %v846
    %v848 = vpop.f32.mrb[0].mxu0
    %849 = vdwg.mxu0
    %v850 = vmul.f32 %v847, 0.001953125
    %v851 = vmul.f32 %v779, %v779
    %v852 = vsub.f32 %v850, %v851
    %v853 = vld [vmem:[%s2] sm:$0x1]
    %v854 = vadd.f32 %v852, 1e-05
    %v855 = vrsqrt.pop %v854
    %v856 = vmul.f32 %v853, %v855
    %v857 = vld [vmem:[%s3] sm:$0x1]
    %v858 = vmul.f32 %v779, %v856
    %v859 = vsub.f32 %v857, %v858
    %v860 = vld [vmem:[%s5] sm:$0xff]
    %vm861 = vcmask 64512
    %v863 = vsel %vm861, %v856, 0
    %865 = vmatprep.subr.mxu0 0.0
    %866 = vmatpush1.msra.mxu0 %v860
    %867 = vmatprep.subr.mxu0 0.0
    %868 = vmatpush1.msra.mxu0 0.0
    %869 = vmatprep.subr.mxu0 0.0
    %870 = vmatpush1.msra.mxu0 0.0
    %871 = vmatprep.subr.mxu0 0.0
    %872 = vmatpush1.msra.mxu0 0.0
    %873 = vmatprep.subr.mxu0 0.0
    %874 = vmatpush1.msra.mxu0 0.0
    %875 = vmatprep.subr.mxu0 0.0
    %876 = vmatpush1.msra.mxu0 0.0
    %877 = vmatprep.subr.mxu0 0.0
    %878 = vmatpush1.msra.mxu0 0.0
    %879 = vmatprep.subr.mxu0 0.0
    %880 = vmatpush1.msra.mxu0 0.0
    %881 = vmatprep.subr.mxu0 0.0
    %882 = vmatpush1.msra.mxu0 0.0
    %883 = vmatprep.subr.mxu0 0.0
    %884 = vmatpush1.msra.mxu0 0.0
    %885 = vmatprep.subr.mxu0 0.0
    %886 = vmatpush1.msra.mxu0 0.0
    %887 = vmatprep.subr.mxu0 0.0
    %888 = vmatpush1.msra.mxu0 0.0
    %889 = vmatprep.subr.mxu0 0.0
    %890 = vmatpush1.msra.mxu0 0.0
    %891 = vmatprep.subr.mxu0 0.0
    %892 = vmatpush1.msra.mxu0 0.0
    %893 = vmatprep.subr.mxu0 0.0
    %894 = vmatpush1.msra.mxu0 0.0
    %895 = vmatprep.subr.mxu0 0.0
    %896 = vmatpush1.msra.mxu0 0.0
    %897 = vmatprep.subr.mxu0 0.0
    %898 = vmatpush1.msra.mxu0 0.0
    %899 = vmatprep.subr.mxu0 0.0
    %900 = vmatpush1.msra.mxu0 0.0
    %901 = vmatprep.subr.mxu0 0.0
    %902 = vmatpush1.msra.mxu0 0.0
    %903 = vmatprep.subr.mxu0 0.0
    %904 = vmatpush1.msra.mxu0 0.0
    %905 = vmatprep.subr.mxu0 0.0
    %906 = vmatpush1.msra.mxu0 0.0
    %907 = vmatprep.subr.mxu0 0.0
    %908 = vmatpush1.msra.mxu0 0.0
    %909 = vmatprep.subr.mxu0 0.0
    %910 = vmatpush1.msra.mxu0 0.0
    %911 = vmatprep.subr.mxu0 0.0
    %912 = vmatpush1.msra.mxu0 0.0
    %913 = vmatprep.subr.mxu0 0.0
    %914 = vmatpush1.msra.mxu0 0.0
    %915 = vmatprep.subr.mxu0 0.0
    %916 = vmatpush1.msra.mxu0 0.0
    %917 = vmatprep.subr.mxu0 0.0
    %918 = vmatpush1.msra.mxu0 0.0
    %919 = vmatprep.subr.mxu0 0.0
    %920 = vmatpush1.msra.mxu0 0.0
    %921 = vmatprep.subr.mxu0 0.0
    %922 = vmatpush1.msra.mxu0 0.0
    %923 = vmatprep.subr.mxu0 0.0
    %924 = vmatpush1.msra.mxu0 0.0
    %925 = vmatprep.subr.mxu0 0.0
    %926 = vmatpush1.msra.mxu0 0.0
    %927 = vmatprep.subr.mxu0 0.0
    %928 = vmatpush1.msra.mxu0 0.0
    %929 = vmatprep.mubr.f32.mxu0 0.0
    %930 = vmatmul.mubr.f32.gmra.mrb[0].mxu0 %v863
    %v931 = vpop.f32.mrb[0].mxu0
    %v932 = vadd.f32 0.0, %v931
    %v933 = vpop.f32.mrb[0].mxu0
    %934 = vdwg.mxu0
    %v936 = vsel %vm861, %v859, 0
    %938 = vmatprep.subr.mxu0 0.0
    %939 = vmatpush1.msra.mxu0 %v860
    %940 = vmatprep.subr.mxu0 0.0
    %941 = vmatpush1.msra.mxu0 0.0
    %942 = vmatprep.subr.mxu0 0.0
    %943 = vmatpush1.msra.mxu0 0.0
    %944 = vmatprep.subr.mxu0 0.0
    %945 = vmatpush1.msra.mxu0 0.0
    %946 = vmatprep.subr.mxu0 0.0
    %947 = vmatpush1.msra.mxu0 0.0
    %948 = vmatprep.subr.mxu0 0.0
    %949 = vmatpush1.msra.mxu0 0.0
    %950 = vmatprep.subr.mxu0 0.0
    %951 = vmatpush1.msra.mxu0 0.0
    %952 = vmatprep.subr.mxu0 0.0
    %953 = vmatpush1.msra.mxu0 0.0
    %954 = vmatprep.subr.mxu0 0.0
    %955 = vmatpush1.msra.mxu0 0.0
    %956 = vmatprep.subr.mxu0 0.0
    %957 = vmatpush1.msra.mxu0 0.0
    %958 = vmatprep.subr.mxu0 0.0
    %959 = vmatpush1.msra.mxu0 0.0
    %960 = vmatprep.subr.mxu0 0.0
    %961 = vmatpush1.msra.mxu0 0.0
    %962 = vmatprep.subr.mxu0 0.0
    %963 = vmatpush1.msra.mxu0 0.0
    %964 = vmatprep.subr.mxu0 0.0
    %965 = vmatpush1.msra.mxu0 0.0
    %966 = vmatprep.subr.mxu0 0.0
    %967 = vmatpush1.msra.mxu0 0.0
    %968 = vmatprep.subr.mxu0 0.0
    %969 = vmatpush1.msra.mxu0 0.0
    %970 = vmatprep.subr.mxu0 0.0
    %971 = vmatpush1.msra.mxu0 0.0
    %972 = vmatprep.subr.mxu0 0.0
    %973 = vmatpush1.msra.mxu0 0.0
    %974 = vmatprep.subr.mxu0 0.0
    %975 = vmatpush1.msra.mxu0 0.0
    %976 = vmatprep.subr.mxu0 0.0
    %977 = vmatpush1.msra.mxu0 0.0
    %978 = vmatprep.subr.mxu0 0.0
    %979 = vmatpush1.msra.mxu0 0.0
    %980 = vmatprep.subr.mxu0 0.0
    %981 = vmatpush1.msra.mxu0 0.0
    %982 = vmatprep.subr.mxu0 0.0
    %983 = vmatpush1.msra.mxu0 0.0
    %984 = vmatprep.subr.mxu0 0.0
    %985 = vmatpush1.msra.mxu0 0.0
    %986 = vmatprep.subr.mxu0 0.0
    %987 = vmatpush1.msra.mxu0 0.0
    %988 = vmatprep.subr.mxu0 0.0
    %989 = vmatpush1.msra.mxu0 0.0
    %990 = vmatprep.subr.mxu0 0.0
    %991 = vmatpush1.msra.mxu0 0.0
    %992 = vmatprep.subr.mxu0 0.0
    %993 = vmatpush1.msra.mxu0 0.0
    %994 = vmatprep.subr.mxu0 0.0
    %995 = vmatpush1.msra.mxu0 0.0
    %996 = vmatprep.subr.mxu0 0.0
    %997 = vmatpush1.msra.mxu0 0.0
    %998 = vmatprep.subr.mxu0 0.0
    %999 = vmatpush1.msra.mxu0 0.0
    %1000 = vmatprep.subr.mxu0 0.0
    %1001 = vmatpush1.msra.mxu0 0.0
    %1002 = vmatprep.mubr.f32.mxu0 0.0
    %1003 = vmatmul.mubr.f32.gmra.mrb[0].mxu0 %v936
    %v1004 = vpop.f32.mrb[0].mxu0
    %v1005 = vadd.f32 0.0, %v1004
    %v1006 = vpop.f32.mrb[0].mxu0
    %1007 = vdwg.mxu0
    %v1008 = vlaneseq
    %v1009 = vshrl.u32 %v1008, 7
    %v1010 = vsub.s32 0, %v1009
    %v1011 = vrot.slane %v932, %v1010
    %v1012 = vmul.f32 %v653, %v1011
    %v1013 = vmul.f32 %v658, %v1011
    %v1014 = vmul.f32 %v663, %v1011
    %v1015 = vmul.f32 %v668, %v1011
    %v1016 = vlaneseq
    %v1017 = vshrl.u32 %v1016, 7
    %v1018 = vsub.s32 0, %v1017
    %v1019 = vrot.slane %v1005, %v1018
    %v1020 = vadd.f32 %v1012, %v1019
    %v1021 = vadd.f32 %v1013, %v1019
    %v1022 = vadd.f32 %v1014, %v1019
    %v1023 = vadd.f32 %v1015, %v1019
    %v1024 = vmax.f32 %v1020, 0.0
    %v1025 = vmax.f32 %v1021, 0.0
    %v1026 = vmax.f32 %v1022, 0.0
    %v1027 = vmax.f32 %v1023, 0.0
    %1028 = vst [vmem:[#allocation7] sm:$0xff] %v1024
    %1029 = vst [vmem:[#allocation7 + $0x8] sm:$0xff] %v1025
    %1030 = vst [vmem:[#allocation7 + $0x10] sm:$0xff] %v1026
    %1031 = vst [vmem:[#allocation7 + $0x18] sm:$0xff] %v1027
    // Predicated region
    $region30: #{tpu_custom_call.1} parent=1 // pred_check
      _
    $region31: #{tpu_custom_call.1} parent=1 // pred_check_branch
      %1033 = sbr.rel (0) target = $region33
    $region32: #{tpu_custom_call.1} parent=1 // pred_region
      %s1035 = ssub.s32 512, 512
      %1036 = vsyncadd [#allocation6], %s1035
      %s1037 = sshll.u32 [#allocation7], 4
      %s1038 = int_to_ptr.vmem [resolvable:$true] %s1037
      %1043 = dma.vmem_to_hbm [thread:$0]  %s1038, 512, %s6, [#allocation6], 128, 128, 8
    $region33: #{tpu_custom_call.1} parent=1 // pred_fallthru
      _
    // Predicated region
    $region34: #{tpu_custom_call.1} parent=1 // pred_check
      _
    $region35: #{tpu_custom_call.1} parent=1 // pred_check_branch
      %1045 = sbr.rel (0) target = $region37
    $region36: #{tpu_custom_call.1} parent=1 // pred_region
      %1046 = dma.done [#allocation6], 512
    $region37: #{tpu_custom_call.1} parent=1 // pred_fallthru
      _
    %1047 = vsyncpa [#allocation5], 1
    %1048 = vsyncpa [#allocation6], 1

</llo_original>
